<compile_context>
chip_gen: v5e
topology: v5e:2x2
jax: 0.10.0
libtpu: 0.0.40
codegen_flags: <defaults>
</compile_context>

<pallas_src>
import functools
import math

import jax
import jax.numpy as jnp
from jax.experimental import pallas as pl
from jax.experimental.pallas import tpu as pltpu


def _vmem_capacity_bytes():
    """Physical VMEM of the local TPU generation (conservative fallback)."""
    try:
        return int(pltpu.get_tpu_info().vmem_capacity_bytes)
    except Exception:
        return 64 * 1024 * 1024  # v7x-sized conservative default


def _sublane_min(dtype):
    """Native sublane packing: 8 rows for 32-bit, 16 for 16-bit, 32 for 8-bit."""
    return {1: 32, 2: 16}.get(jnp.dtype(dtype).itemsize, 8)


def _pick_divisor(dim, align, limit):
    """Largest divisor of `dim` that is a multiple of `align` (or the full dim)
    and <= `limit`; falls back to the smallest valid divisor (correctness first)."""
    valid = [d for d in range(1, dim + 1)
             if dim % d == 0 and (d % align == 0 or d == dim)]
    fitting = [d for d in valid if d <= limit]
    return max(fitting) if fitting else min(valid)


def _choose_block(shape, perm, dtype, budget_bytes):
    """Per-input-axis block sizes for a 3-axis permute under a VMEM budget."""
    itemsize = jnp.dtype(dtype).itemsize
    smin = _sublane_min(dtype)
    lane_axes = {2, perm[2]}                 # lane dim of input and/or output tile
    sublane_axes = {1, perm[1]} - lane_axes  # sublane dim on at least one side

    heavy = perm[2] == 0                     # leading axis -> lanes: cross-lane relayout
    if heavy:
        budget_bytes //= 2                   # headroom for Mosaic's transpose intermediate
    budget_elems = max(1, budget_bytes // itemsize)

    def role_min(a):
        if a in lane_axes:
            return min(128, shape[a])
        if a in sublane_axes:
            return min(smin, shape[a])
        return 1

    block = [None, None, None]

    def room_for(a):
        prod = 1
        for b in range(3):
            if b != a:
                prod *= block[b] if block[b] is not None else role_min(b)
        return max(1, budget_elems // prod)

    # Assign the most constrained axes first: lane, then sublane, then batch.
    order = sorted(range(3),
                   key=lambda a: 0 if a in lane_axes else (1 if a in sublane_axes else 2))
    for a in order:
        dim = shape[a]
        limit = room_for(a)
        if a in lane_axes:
            block[a] = dim if (dim % 128 == 0 and dim <= limit) \
                else _pick_divisor(dim, 128, limit)
        elif a in sublane_axes:
            if heavy:
                limit = min(limit, 2 * smin)  # bound relayout / vreg footprint
            block[a] = dim if (dim % smin == 0 and dim <= limit) \
                else _pick_divisor(dim, smin, limit)
        else:  # pure batch axis on both sides: no alignment constraint
            block[a] = _pick_divisor(dim, 1, limit)

    return tuple(block), lane_axes, sublane_axes, smin


def _split_for_parallelism(shape, block, lane_axes, sublane_axes, smin, target=4):
    """Halve blocks (alignment-preserving) until the grid has >= target steps so
    v7x's two TensorCores both get work and the DMA pipeline can overlap."""
    block = list(block)

    def align_of(a):
        if a in lane_axes:
            return 128
        if a in sublane_axes:
            return smin
        return 1

    def nblocks():
        return math.prod(shape[a] // block[a] for a in range(3))

    # Prefer splitting batch axes, then sublane, then lane (largest block first).
    order = sorted(range(3),
                   key=lambda a: (2 if a in lane_axes else (1 if a in sublane_axes else 0),
                                  -block[a]))
    while nblocks() < target:
        for a in order:
            nb = block[a] // 2
            if block[a] % 2 == 0 and nb > 0 and shape[a] % nb == 0 and nb % align_of(a) == 0:
                block[a] = nb
                break
        else:
            break
    return tuple(block)


def _permute_kernel(perm, x_ref, o_ref):
    # Per-tile permutation: a (sublane,lane) XLU transpose for (0,2,1)-style
    # tiles, a general well-aligned tile transpose otherwise.
    o_ref[...] = jnp.transpose(x_ref[...], perm)


def permute_change(x, n1, n2, n3):
    """Pallas equivalent of torch `x.permute(n1, n2, n3)` for rank-3 x."""
    assert x.ndim == 3, "permute_change expects a rank-3 input"
    perm = (int(n1), int(n2), int(n3))
    assert sorted(perm) == [0, 1, 2], f"invalid permutation {perm}"

    if perm == (0, 1, 2):
        return x  # identity: free in a functional framework, skip the copy

    shape = x.shape
    itemsize = jnp.dtype(x.dtype).itemsize
    vmem_cap = _vmem_capacity_bytes()
    budget = (8 << 20) if vmem_cap >= (100 << 20) else (4 << 20)

    block, lane_axes, sublane_axes, smin = _choose_block(shape, perm, x.dtype, budget)
    block = _split_for_parallelism(shape, block, lane_axes, sublane_axes, smin, target=4)

    inv_perm = tuple(perm.index(a) for a in range(3))
    out_shape = tuple(shape[p] for p in perm)
    out_block = tuple(block[p] for p in perm)
    # Grid iterates in OUTPUT-axis order: innermost grid axis == output lane
    # axis, so consecutive steps write sequential HBM (writeback locality).
    grid = tuple(out_shape[t] // out_block[t] for t in range(3))

    def in_index(g0, g1, g2, _inv=inv_perm):
        g = (g0, g1, g2)
        return tuple(g[_inv[a]] for a in range(3))

    def out_index(g0, g1, g2):
        return (g0, g1, g2)

    block_bytes = math.prod(block) * itemsize
    vmem_limit = int(min(int(0.75 * vmem_cap), max(32 << 20, 6 * block_bytes)))

    kernel = functools.partial(_permute_kernel, perm)
    # TODO(synk): for perm[2]==0 (leading axis -> lanes), if a bundle dump shows
    # the in-tile transpose is XLU-bound rather than HBM-bound, split into a
    # (0,2,1) lane/sublane-transpose pass plus a permuted-index_map copy pass.
    return pl.pallas_call(
        kernel,
        out_shape=jax.ShapeDtypeStruct(out_shape, x.dtype),
        grid=grid,
        in_specs=[pl.BlockSpec(block, in_index)],
        out_specs=pl.BlockSpec(out_block, out_index),
        compiler_params=pltpu.CompilerParams(
            dimension_semantics=("parallel", "parallel", "parallel"),
            vmem_limit_bytes=vmem_limit),
        cost_estimate=pl.CostEstimate(
            flops=0, transcendentals=0,
            bytes_accessed=2 * x.size * itemsize),
    )(x)


if __name__ == "__main__":
    key = jax.random.PRNGKey(0)
    # Rank-3 input, non-square and big enough (~3 MiB f32) that the per-axis
    # tile roles, the grid reordering and the parallelism split are exercised.
    x = jax.random.normal(key, (4, 384, 512), dtype=jnp.float32)

    # 2-D tile-transpose path, full 3-axis path, leading-swap path, identity.
    for perm in [(0, 2, 1), (2, 0, 1), (1, 0, 2), (0, 1, 2)]:
        out = jax.block_until_ready(permute_change(x, *perm))
        ref = jnp.transpose(x, perm)
        assert out.shape == ref.shape, (perm, out.shape, ref.shape)
        assert jnp.array_equal(out, ref), f"mismatch vs reference for perm={perm}"

    # dtype-aware sublane path (bf16 -> 16-row minimum tiles).
    xb = x.astype(jnp.bfloat16)
    outb = jax.block_until_ready(permute_change(xb, 0, 2, 1))
    assert jnp.array_equal(outb, jnp.transpose(xb, (0, 2, 1)))

    print("KERNEL_OK")
</pallas_src>

<mosaic_0001>
module attributes {stable_mosaic.version = 11 : i64} {
  func.func @_permute_kernel(%arg0: i32, %arg1: i32, %arg2: i32, %arg3: memref<1x384x512xf32, #tpu.memory_space<vmem>>, %arg4: memref<1x512x384xf32, #tpu.memory_space<vmem>>) attributes {dimension_semantics = [#tpu.dimension_semantics<parallel>, #tpu.dimension_semantics<parallel>, #tpu.dimension_semantics<parallel>], iteration_bounds = array<i64: 4, 1, 1>, scalar_prefetch = 0 : i64, scratch_operands = 0 : i64, tpu.core_type = #tpu.core_type<tc>, window_params = [{transform_indices = @transform_0, window_bounds = array<i64: 1, 384, 512>}, {transform_indices = @transform_1, window_bounds = array<i64: 1, 512, 384>}]} {
    %c0 = arith.constant 0 : index
    %c0_0 = arith.constant 0 : index
    %c0_1 = arith.constant 0 : index
    %0 = vector.load %arg3[%c0, %c0_0, %c0_1] : memref<1x384x512xf32, #tpu.memory_space<vmem>>, vector<1x384x512xf32>
    %1 = tpu.transpose %0, [0, 2, 1] : vector<1x384x512xf32> -> vector<1x512x384xf32>
    %c0_2 = arith.constant 0 : index
    %c0_3 = arith.constant 0 : index
    %c0_4 = arith.constant 0 : index
    %2 = vector.load %arg4[%c0_2, %c0_3, %c0_4] : memref<1x512x384xf32, #tpu.memory_space<vmem>>, vector<1x512x384xf32>
    tpu.vector_store %arg4[%c0_2, %c0_3, %c0_4], %1 {strides = array<i32>} : memref<1x512x384xf32, #tpu.memory_space<vmem>>, vector<1x512x384xf32>,
    return
  }
  func.func @transform_0(%arg0: i32, %arg1: i32, %arg2: i32) -> (i32, i32, i32) {
    %c0_i32 = arith.constant 0 : i32
    return %arg0, %arg2, %arg1 : i32, i32, i32
  }
  func.func @transform_1(%arg0: i32, %arg1: i32, %arg2: i32) -> (i32, i32, i32) {
    %c0_i32 = arith.constant 0 : i32
    return %arg0, %arg1, %arg2 : i32, i32, i32
  }
}

</mosaic_0001>

<llo_original>
// kernel: tpu_custom_call.1
$region0: #{tpu_custom_call.1}
  #allocation0 [shape = 'u32[]', space=smem, size = 0x4, offset = 0x4, fixed_abs, tag = 'smem constant byte address 0x4 - core index']
  #allocation1 [shape = 'u32[72,128]{1,0:T(1,128)}', space=vmem, size = 0x9000, scoped, tag = 'internal scratch']
  %s0 = inlined_call_operand.hbm [shape: f32[4,384,512], index: 0, kind: input, shape index: {}]
  %s1 = inlined_call_operand.hbm [shape: f32[4,512,384], index: 1, kind: output, shape index: {}]
  %s2 = sld [smem:[#allocation0]]
  $region41: #{tpu_custom_call.1} parent=0
    _
  %s4 = ssub.s32 1, %s2
  %s5 = scalar_select 0, %s4, %s2
  $region1: #{tpu_custom_call.1} parent=0
    #allocation2 [shape = 'u8[1572864]{0}', space=vmem, size = 0x180000, scoped, tag = 'input window, operand 0']
    #allocation3 [shape = 's32[2]{0}', space=sflag, size = 0x8, scoped, tag = 'scoped memory for tpu_custom_call.1']
    #allocation4 [shape = 's32[2]{0}', space=sflag, size = 0x8, scoped, tag = 'scoped memory for tpu_custom_call.1']
    #allocation5 [shape = 'u8[1572864]{0}', space=vmem, size = 0x180000, scoped, tag = 'output window, operand 0']
    %6 = vsyncpa [#allocation3], 0
    %s7 = scalar_lea.sflag [#allocation3], 1
    %8 = vsyncpa %s7, 0
    %9 = vsyncpa [#allocation4], 0
    %s10 = scalar_lea.sflag [#allocation4], 1
    %11 = vsyncpa %s10, 0
    loop: start=0, step=1, limit=6
    $region2: #{tpu_custom_call.1} parent=1 // loop_pre_header
      _
    $region3: #{tpu_custom_call.1} parent=1 // loop_header
      %s13 = sphi 0, %s17
      %p14 = scmp.ge.s32.totalorder %s13, 6
      %s20 = sphi 0, %s39
      %s21 = sphi 0, %s35
      %s22 = sphi 0, %s31
      %s23 = sphi 0, %s20
      %s24 = sphi 0, %s21
      %s25 = sphi 0, %s22
      %s26 = sphi 0, %s23
      %s27 = sphi 0, %s24
      %s28 = sphi 0, %s25
      %s46 = sphi 0, %s48
      %s49 = sphi 0, %s46
      %s50 = sphi 0, %s49
      %s66 = sphi 0, %s50
      %s76 = sphi 0, %s78
      %s79 = sphi 0, %s76
      %s80 = sphi 0, %s79
      %s96 = sphi 0, %s80
    $region4: #{tpu_custom_call.1} parent=1 // loop_header_branch
      %16 = sbr.rel (%p14) target = $region8
    $region5: #{tpu_custom_call.1} parent=1 // loop_body
      %s18 = ssub.s32 %s13, 1
      %s19 = ssub.s32 %s13, 2
      %s29 = sadd.s32 1, %s22
      %p30 = scmp.ge.s32.totalorder %s29, 1
      %s31 = scalar_select %p30, 0, %s29
      %s32 = sadd.s32 1, %s21
      %s33 = scalar_select %p30, %s32, %s21
      %p34 = scmp.ge.s32.totalorder %s33, 1
      %s35 = scalar_select %p34, 0, %s33
      %s36 = sadd.s32 1, %s20
      %s37 = scalar_select %p34, %s36, %s20
      %p38 = scmp.ge.s32.totalorder %s37, 4
      %s39 = scalar_select %p38, 0, %s37
      %s40 = ssub.s32 %s20, %s39
      %s41 = ssub.s32 %s22, %s31
      %s42 = sor.u32 %s40, %s41
      %s43 = ssub.s32 %s21, %s35
      %s44 = sor.u32 %s42, %s43
      %p45 = scmp.eq.s32.totalorder %s44, 0
      %s47 = sadd.s32 %s46, 1
      %s48 = scalar_select %p45, %s46, %s47
      %p51 = pneg %p45
      %p52 = scmp.eq.s32.totalorder %s13, 3
      %p53 = por %p51, %p52
      %p54 = scmp.ne.s32.totalorder %s46, %s49
      %p55 = scmp.eq.s32.totalorder %s13, 0
      %p56 = por %p54, %p55
      %p57 = scmp.ne.s32.totalorder %s46, %s49
      %p58 = scmp.eq.s32.totalorder %s18, 3
      %p59 = por %p57, %p58
      %p60 = scmp.ne.s32.totalorder %s49, %s50
      %p61 = scmp.eq.s32.totalorder %s18, 0
      %p62 = por %p60, %p61
      %p63 = scmp.ne.s32.totalorder %s49, %s50
      %p64 = scmp.eq.s32.totalorder %s19, 3
      %p65 = por %p63, %p64
      %p67 = scmp.ne.s32.totalorder %s50, %s66
      %p68 = scmp.eq.s32.totalorder %s19, 0
      %p69 = por %p67, %p68
      %s70 = ssub.s32 %s20, %s39
      %s71 = ssub.s32 %s21, %s35
      %s72 = sor.u32 %s70, %s71
      %s73 = ssub.s32 %s22, %s31
      %s74 = sor.u32 %s72, %s73
      %p75 = scmp.eq.s32.totalorder %s74, 0
      %s77 = sadd.s32 %s76, 1
      %s78 = scalar_select %p75, %s76, %s77
      %p81 = pneg %p75
      %p82 = scmp.eq.s32.totalorder %s13, 3
      %p83 = por %p81, %p82
      %p84 = scmp.ne.s32.totalorder %s76, %s79
      %p85 = scmp.eq.s32.totalorder %s13, 0
      %p86 = por %p84, %p85
      %p87 = scmp.ne.s32.totalorder %s76, %s79
      %p88 = scmp.eq.s32.totalorder %s18, 3
      %p89 = por %p87, %p88
      %p90 = scmp.ne.s32.totalorder %s79, %s80
      %p91 = scmp.eq.s32.totalorder %s18, 0
      %p92 = por %p90, %p91
      %p93 = scmp.ne.s32.totalorder %s79, %s80
      %p94 = scmp.eq.s32.totalorder %s19, 3
      %p95 = por %p93, %p94
      %p97 = scmp.ne.s32.totalorder %s80, %s96
      %p98 = scmp.eq.s32.totalorder %s19, 0
      %p99 = por %p97, %p98
      %p100 = scmp.le.s32.totalorder 1, %s13
      %p101 = scmp.lt.s32.totalorder %s13, 5
      %p102 = pnand %p100, %p101
      %p103 = pneg %p102
      // Predicated region
      $region9: #{tpu_custom_call.1} parent=5 // pred_check
        _
      $region10: #{tpu_custom_call.1} parent=5 // pred_check_branch
        %105 = sbr.rel (%p102) target = $region12
      $region11: #{tpu_custom_call.1} parent=5 // pred_region
        %s106 = ssub.s32 %s13, 1
      $region12: #{tpu_custom_call.1} parent=5 // pred_fallthru
        _
      %p107 = scmp.lt.s32.totalorder %s13, 4
      // Predicated region
      $region13: #{tpu_custom_call.1} parent=5 // pred_check
        %p108 = pneg %p107
      $region14: #{tpu_custom_call.1} parent=5 // pred_check_branch
        %110 = sbr.rel (%p108) target = $region16
      $region15: #{tpu_custom_call.1} parent=5 // pred_region
        // Predicated region
        $region17: #{tpu_custom_call.1} parent=15 // pred_check
          %p111 = pneg %p56
        $region18: #{tpu_custom_call.1} parent=15 // pred_check_branch
          %113 = sbr.rel (%p111) target = $region20
        $region19: #{tpu_custom_call.1} parent=15 // pred_region
          %s114 = sand.u32 %s46, 1
          %s115 = scalar_lea.sflag [#allocation3], %s114
          %s116 = sand.u32 %s46, 1
          %s117 = smul.addr %s116, 1536
          %s118 = scalar_lea.vmem [#allocation2], %s117
          %s119 = smul.u32 48, %s22
          %s120 = smul.u32 4, %s21
          %122 = vsyncadd %s115, 0
          %s123 = smul.addr %s119, 4
          %s124 = sadd.s32 %s120, %s123
          %s125 = smul.addr %s20, 192
          %s126 = sadd.s32 %s124, %s125
          %s127 = smul.addr %s126, 8
          %s128 = scalar_lea.hbm %s0, %s127
          %s129 = sshll.u32 %s128, 4
          %s130 = int_to_ptr.hbm [resolvable:$true] %s129
          %s131 = sshll.u32 %s118, 4
          %s132 = int_to_ptr.vmem [resolvable:$true] %s131
          %137 = dma.hbm_to_vmem [thread:$0]  %s130, 24576, %s132, %s115, 512, 512, 32
        $region20: #{tpu_custom_call.1} parent=15 // pred_fallthru
          _
      $region16: #{tpu_custom_call.1} parent=5 // pred_fallthru
        _
      %p138 = scmp.le.s32.totalorder 1, %s13
      %p139 = scmp.lt.s32.totalorder %s13, 5
      %p140 = pnand %p138, %p139
      %p141 = pneg %p140
      // Predicated region
      $region21: #{tpu_custom_call.1} parent=5 // pred_check
        _
      $region22: #{tpu_custom_call.1} parent=5 // pred_check_branch
        %143 = sbr.rel (%p140) target = $region24
      $region23: #{tpu_custom_call.1} parent=5 // pred_region
        %s144 = ssub.s32 %s13, 1
        %s145 = sand.u32 %s49, 1
        %s146 = scalar_lea.sflag [#allocation3], %s145
        %s147 = sand.u32 %s49, 1
        %s148 = smul.addr %s147, 1536
        %s149 = scalar_lea.vmem [#allocation2], %s148
        // Predicated region
        $region25: #{tpu_custom_call.1} parent=23 // pred_check
          %p150 = pneg %p62
        $region26: #{tpu_custom_call.1} parent=23 // pred_check_branch
          %152 = sbr.rel (%p150) target = $region28
        $region27: #{tpu_custom_call.1} parent=23 // pred_region
          %154 = dma.done %s146, 24576
        $region28: #{tpu_custom_call.1} parent=23 // pred_fallthru
          _
        %s155 = sand.u32 %s49, 1
        %s156 = scalar_lea.sflag [#allocation3], %s155
        %s157 = sand.u32 %s49, 1
        %s158 = smul.addr %s157, 1536
        %s159 = scalar_lea.vmem [#allocation2], %s158
        %p160 = pneg %p62
        %p161 = pneg %p59
        %p162 = pneg %p92
        %p163 = pneg %p89
        %s164 = sand.u32 %s79, 1
        %s165 = scalar_lea.sflag [#allocation4], %s164
        %s166 = sand.u32 %s79, 1
        %s167 = smul.addr %s166, 1536
        %s168 = scalar_lea.vmem [#allocation5], %s167
        %s169 = smul.u32 48, %s25
        %s170 = smul.u32 4, %s24
        %s171 = smul.u32 64, %s24
        %s172 = smul.u32 3, %s25
        %v173 = vld [vmem:[%s149] sm:$0xff]
        %v174 = vld [vmem:[%s149 + $0x8] sm:$0xff]
        %v175 = vld [vmem:[%s149 + $0x10] sm:$0xff]
        %v176 = vld [vmem:[%s149 + $0x18] sm:$0xff]
        %v177 = vld [vmem:[%s149 + $0x20] sm:$0xff]
        %v178 = vld [vmem:[%s149 + $0x28] sm:$0xff]
        %v179 = vld [vmem:[%s149 + $0x30] sm:$0xff]
        %v180 = vld [vmem:[%s149 + $0x38] sm:$0xff]
        %v181 = vld [vmem:[%s149 + $0x40] sm:$0xff]
        %v182 = vld [vmem:[%s149 + $0x48] sm:$0xff]
        %v183 = vld [vmem:[%s149 + $0x50] sm:$0xff]
        %v184 = vld [vmem:[%s149 + $0x58] sm:$0xff]
        %v185 = vld [vmem:[%s149 + $0x60] sm:$0xff]
        %v186 = vld [vmem:[%s149 + $0x68] sm:$0xff]
        %v187 = vld [vmem:[%s149 + $0x70] sm:$0xff]
        %v188 = vld [vmem:[%s149 + $0x78] sm:$0xff]
        %v189 = vld [vmem:[%s149 + $0x80] sm:$0xff]
        %v190 = vld [vmem:[%s149 + $0x88] sm:$0xff]
        %v191 = vld [vmem:[%s149 + $0x90] sm:$0xff]
        %v192 = vld [vmem:[%s149 + $0x98] sm:$0xff]
        %v193 = vld [vmem:[%s149 + $0xa0] sm:$0xff]
        %v194 = vld [vmem:[%s149 + $0xa8] sm:$0xff]
        %v195 = vld [vmem:[%s149 + $0xb0] sm:$0xff]
        %v196 = vld [vmem:[%s149 + $0xb8] sm:$0xff]
        %v197 = vld [vmem:[%s149 + $0xc0] sm:$0xff]
        %v198 = vld [vmem:[%s149 + $0xc8] sm:$0xff]
        %v199 = vld [vmem:[%s149 + $0xd0] sm:$0xff]
        %v200 = vld [vmem:[%s149 + $0xd8] sm:$0xff]
        %v201 = vld [vmem:[%s149 + $0xe0] sm:$0xff]
        %v202 = vld [vmem:[%s149 + $0xe8] sm:$0xff]
        %v203 = vld [vmem:[%s149 + $0xf0] sm:$0xff]
        %v204 = vld [vmem:[%s149 + $0xf8] sm:$0xff]
        %v205 = vld [vmem:[%s149 + $0x100] sm:$0xff]
        %v206 = vld [vmem:[%s149 + $0x108] sm:$0xff]
        %v207 = vld [vmem:[%s149 + $0x110] sm:$0xff]
        %v208 = vld [vmem:[%s149 + $0x118] sm:$0xff]
        %v209 = vld [vmem:[%s149 + $0x120] sm:$0xff]
        %v210 = vld [vmem:[%s149 + $0x128] sm:$0xff]
        %v211 = vld [vmem:[%s149 + $0x130] sm:$0xff]
        %v212 = vld [vmem:[%s149 + $0x138] sm:$0xff]
        %v213 = vld [vmem:[%s149 + $0x140] sm:$0xff]
        %v214 = vld [vmem:[%s149 + $0x148] sm:$0xff]
        %v215 = vld [vmem:[%s149 + $0x150] sm:$0xff]
        %v216 = vld [vmem:[%s149 + $0x158] sm:$0xff]
        %v217 = vld [vmem:[%s149 + $0x160] sm:$0xff]
        %v218 = vld [vmem:[%s149 + $0x168] sm:$0xff]
        %v219 = vld [vmem:[%s149 + $0x170] sm:$0xff]
        %v220 = vld [vmem:[%s149 + $0x178] sm:$0xff]
        %v221 = vld [vmem:[%s149 + $0x180] sm:$0xff]
        %v222 = vld [vmem:[%s149 + $0x188] sm:$0xff]
        %v223 = vld [vmem:[%s149 + $0x190] sm:$0xff]
        %v224 = vld [vmem:[%s149 + $0x198] sm:$0xff]
        %v225 = vld [vmem:[%s149 + $0x1a0] sm:$0xff]
        %v226 = vld [vmem:[%s149 + $0x1a8] sm:$0xff]
        %v227 = vld [vmem:[%s149 + $0x1b0] sm:$0xff]
        %v228 = vld [vmem:[%s149 + $0x1b8] sm:$0xff]
        %v229 = vld [vmem:[%s149 + $0x1c0] sm:$0xff]
        %v230 = vld [vmem:[%s149 + $0x1c8] sm:$0xff]
        %v231 = vld [vmem:[%s149 + $0x1d0] sm:$0xff]
        %v232 = vld [vmem:[%s149 + $0x1d8] sm:$0xff]
        %v233 = vld [vmem:[%s149 + $0x1e0] sm:$0xff]
        %v234 = vld [vmem:[%s149 + $0x1e8] sm:$0xff]
        %v235 = vld [vmem:[%s149 + $0x1f0] sm:$0xff]
        %v236 = vld [vmem:[%s149 + $0x1f8] sm:$0xff]
        %v237 = vld [vmem:[%s149 + $0x200] sm:$0xff]
        %v238 = vld [vmem:[%s149 + $0x208] sm:$0xff]
        %v239 = vld [vmem:[%s149 + $0x210] sm:$0xff]
        %v240 = vld [vmem:[%s149 + $0x218] sm:$0xff]
        %v241 = vld [vmem:[%s149 + $0x220] sm:$0xff]
        %v242 = vld [vmem:[%s149 + $0x228] sm:$0xff]
        %v243 = vld [vmem:[%s149 + $0x230] sm:$0xff]
        %v244 = vld [vmem:[%s149 + $0x238] sm:$0xff]
        %v245 = vld [vmem:[%s149 + $0x240] sm:$0xff]
        %v246 = vld [vmem:[%s149 + $0x248] sm:$0xff]
        %v247 = vld [vmem:[%s149 + $0x250] sm:$0xff]
        %v248 = vld [vmem:[%s149 + $0x258] sm:$0xff]
        %v249 = vld [vmem:[%s149 + $0x260] sm:$0xff]
        %v250 = vld [vmem:[%s149 + $0x268] sm:$0xff]
        %v251 = vld [vmem:[%s149 + $0x270] sm:$0xff]
        %v252 = vld [vmem:[%s149 + $0x278] sm:$0xff]
        %v253 = vld [vmem:[%s149 + $0x280] sm:$0xff]
        %v254 = vld [vmem:[%s149 + $0x288] sm:$0xff]
        %v255 = vld [vmem:[%s149 + $0x290] sm:$0xff]
        %v256 = vld [vmem:[%s149 + $0x298] sm:$0xff]
        %v257 = vld [vmem:[%s149 + $0x2a0] sm:$0xff]
        %v258 = vld [vmem:[%s149 + $0x2a8] sm:$0xff]
        %v259 = vld [vmem:[%s149 + $0x2b0] sm:$0xff]
        %v260 = vld [vmem:[%s149 + $0x2b8] sm:$0xff]
        %v261 = vld [vmem:[%s149 + $0x2c0] sm:$0xff]
        %v262 = vld [vmem:[%s149 + $0x2c8] sm:$0xff]
        %v263 = vld [vmem:[%s149 + $0x2d0] sm:$0xff]
        %v264 = vld [vmem:[%s149 + $0x2d8] sm:$0xff]
        %v265 = vld [vmem:[%s149 + $0x2e0] sm:$0xff]
        %v266 = vld [vmem:[%s149 + $0x2e8] sm:$0xff]
        %v267 = vld [vmem:[%s149 + $0x2f0] sm:$0xff]
        %v268 = vld [vmem:[%s149 + $0x2f8] sm:$0xff]
        %v269 = vld [vmem:[%s149 + $0x300] sm:$0xff]
        %v270 = vld [vmem:[%s149 + $0x308] sm:$0xff]
        %v271 = vld [vmem:[%s149 + $0x310] sm:$0xff]
        %v272 = vld [vmem:[%s149 + $0x318] sm:$0xff]
        %v273 = vld [vmem:[%s149 + $0x320] sm:$0xff]
        %v274 = vld [vmem:[%s149 + $0x328] sm:$0xff]
        %v275 = vld [vmem:[%s149 + $0x330] sm:$0xff]
        %v276 = vld [vmem:[%s149 + $0x338] sm:$0xff]
        %v277 = vld [vmem:[%s149 + $0x340] sm:$0xff]
        %v278 = vld [vmem:[%s149 + $0x348] sm:$0xff]
        %v279 = vld [vmem:[%s149 + $0x350] sm:$0xff]
        %v280 = vld [vmem:[%s149 + $0x358] sm:$0xff]
        %v281 = vld [vmem:[%s149 + $0x360] sm:$0xff]
        %v282 = vld [vmem:[%s149 + $0x368] sm:$0xff]
        %v283 = vld [vmem:[%s149 + $0x370] sm:$0xff]
        %v284 = vld [vmem:[%s149 + $0x378] sm:$0xff]
        %v285 = vld [vmem:[%s149 + $0x380] sm:$0xff]
        %v286 = vld [vmem:[%s149 + $0x388] sm:$0xff]
        %v287 = vld [vmem:[%s149 + $0x390] sm:$0xff]
        %v288 = vld [vmem:[%s149 + $0x398] sm:$0xff]
        %v289 = vld [vmem:[%s149 + $0x3a0] sm:$0xff]
        %v290 = vld [vmem:[%s149 + $0x3a8] sm:$0xff]
        %v291 = vld [vmem:[%s149 + $0x3b0] sm:$0xff]
        %v292 = vld [vmem:[%s149 + $0x3b8] sm:$0xff]
        %v293 = vld [vmem:[%s149 + $0x3c0] sm:$0xff]
        %v294 = vld [vmem:[%s149 + $0x3c8] sm:$0xff]
        %v295 = vld [vmem:[%s149 + $0x3d0] sm:$0xff]
        %v296 = vld [vmem:[%s149 + $0x3d8] sm:$0xff]
        %v297 = vld [vmem:[%s149 + $0x3e0] sm:$0xff]
        %v298 = vld [vmem:[%s149 + $0x3e8] sm:$0xff]
        %v299 = vld [vmem:[%s149 + $0x3f0] sm:$0xff]
        %v300 = vld [vmem:[%s149 + $0x3f8] sm:$0xff]
        %v301 = vld [vmem:[%s149 + $0x400] sm:$0xff]
        %v302 = vld [vmem:[%s149 + $0x408] sm:$0xff]
        %v303 = vld [vmem:[%s149 + $0x410] sm:$0xff]
        %v304 = vld [vmem:[%s149 + $0x418] sm:$0xff]
        %v305 = vld [vmem:[%s149 + $0x420] sm:$0xff]
        %v306 = vld [vmem:[%s149 + $0x428] sm:$0xff]
        %v307 = vld [vmem:[%s149 + $0x430] sm:$0xff]
        %v308 = vld [vmem:[%s149 + $0x438] sm:$0xff]
        %v309 = vld [vmem:[%s149 + $0x440] sm:$0xff]
        %v310 = vld [vmem:[%s149 + $0x448] sm:$0xff]
        %v311 = vld [vmem:[%s149 + $0x450] sm:$0xff]
        %v312 = vld [vmem:[%s149 + $0x458] sm:$0xff]
        %v313 = vld [vmem:[%s149 + $0x460] sm:$0xff]
        %v314 = vld [vmem:[%s149 + $0x468] sm:$0xff]
        %v315 = vld [vmem:[%s149 + $0x470] sm:$0xff]
        %v316 = vld [vmem:[%s149 + $0x478] sm:$0xff]
        %v317 = vld [vmem:[%s149 + $0x480] sm:$0xff]
        %v318 = vld [vmem:[%s149 + $0x488] sm:$0xff]
        %v319 = vld [vmem:[%s149 + $0x490] sm:$0xff]
        %v320 = vld [vmem:[%s149 + $0x498] sm:$0xff]
        %v321 = vld [vmem:[%s149 + $0x4a0] sm:$0xff]
        %v322 = vld [vmem:[%s149 + $0x4a8] sm:$0xff]
        %v323 = vld [vmem:[%s149 + $0x4b0] sm:$0xff]
        %v324 = vld [vmem:[%s149 + $0x4b8] sm:$0xff]
        %v325 = vld [vmem:[%s149 + $0x4c0] sm:$0xff]
        %v326 = vld [vmem:[%s149 + $0x4c8] sm:$0xff]
        %v327 = vld [vmem:[%s149 + $0x4d0] sm:$0xff]
        %v328 = vld [vmem:[%s149 + $0x4d8] sm:$0xff]
        %v329 = vld [vmem:[%s149 + $0x4e0] sm:$0xff]
        %v330 = vld [vmem:[%s149 + $0x4e8] sm:$0xff]
        %v331 = vld [vmem:[%s149 + $0x4f0] sm:$0xff]
        %v332 = vld [vmem:[%s149 + $0x4f8] sm:$0xff]
        %v333 = vld [vmem:[%s149 + $0x500] sm:$0xff]
        %v334 = vld [vmem:[%s149 + $0x508] sm:$0xff]
        %v335 = vld [vmem:[%s149 + $0x510] sm:$0xff]
        %v336 = vld [vmem:[%s149 + $0x518] sm:$0xff]
        %v337 = vld [vmem:[%s149 + $0x520] sm:$0xff]
        %v338 = vld [vmem:[%s149 + $0x528] sm:$0xff]
        %v339 = vld [vmem:[%s149 + $0x530] sm:$0xff]
        %v340 = vld [vmem:[%s149 + $0x538] sm:$0xff]
        %v341 = vld [vmem:[%s149 + $0x540] sm:$0xff]
        %v342 = vld [vmem:[%s149 + $0x548] sm:$0xff]
        %v343 = vld [vmem:[%s149 + $0x550] sm:$0xff]
        %v344 = vld [vmem:[%s149 + $0x558] sm:$0xff]
        %v345 = vld [vmem:[%s149 + $0x560] sm:$0xff]
        %v346 = vld [vmem:[%s149 + $0x568] sm:$0xff]
        %v347 = vld [vmem:[%s149 + $0x570] sm:$0xff]
        %v348 = vld [vmem:[%s149 + $0x578] sm:$0xff]
        %v349 = vld [vmem:[%s149 + $0x580] sm:$0xff]
        %v350 = vld [vmem:[%s149 + $0x588] sm:$0xff]
        %v351 = vld [vmem:[%s149 + $0x590] sm:$0xff]
        %v352 = vld [vmem:[%s149 + $0x598] sm:$0xff]
        %v353 = vld [vmem:[%s149 + $0x5a0] sm:$0xff]
        %v354 = vld [vmem:[%s149 + $0x5a8] sm:$0xff]
        %v355 = vld [vmem:[%s149 + $0x5b0] sm:$0xff]
        %v356 = vld [vmem:[%s149 + $0x5b8] sm:$0xff]
        %v357 = vld [vmem:[%s149 + $0x5c0] sm:$0xff]
        %v358 = vld [vmem:[%s149 + $0x5c8] sm:$0xff]
        %v359 = vld [vmem:[%s149 + $0x5d0] sm:$0xff]
        %v360 = vld [vmem:[%s149 + $0x5d8] sm:$0xff]
        %v361 = vld [vmem:[%s149 + $0x5e0] sm:$0xff]
        %v362 = vld [vmem:[%s149 + $0x5e8] sm:$0xff]
        %v363 = vld [vmem:[%s149 + $0x5f0] sm:$0xff]
        %v364 = vld [vmem:[%s149 + $0x5f8] sm:$0xff]
        %365 = vxpose.xlu0.b32.start [1/16] %v173, 128
        %366 = vxpose.xlu0.b32.cont [2/16] %v177, 128
        %367 = vxpose.xlu0.b32.cont [3/16] %v181, 128
        %368 = vxpose.xlu0.b32.cont [4/16] %v185, 128
        %369 = vxpose.xlu0.b32.cont [5/16] %v189, 128
        %370 = vxpose.xlu0.b32.cont [6/16] %v193, 128
        %371 = vxpose.xlu0.b32.cont [7/16] %v197, 128
        %372 = vxpose.xlu0.b32.cont [8/16] %v201, 128
        %373 = vxpose.xlu0.b32.cont [9/16] %v205, 128
        %374 = vxpose.xlu0.b32.cont [10/16] %v209, 128
        %375 = vxpose.xlu0.b32.cont [11/16] %v213, 128
        %376 = vxpose.xlu0.b32.cont [12/16] %v217, 128
        %377 = vxpose.xlu0.b32.cont [13/16] %v221, 128
        %378 = vxpose.xlu0.b32.cont [14/16] %v225, 128
        %379 = vxpose.xlu0.b32.cont [15/16] %v229, 128
        %380 = vxpose.xlu0.b32.end [16/16] %v233, 128
        %v381 = vpop.trf.xlu0
        %v382 = vpop.trf.xlu0
        %v383 = vpop.trf.xlu0
        %v384 = vpop.trf.xlu0
        %v385 = vpop.trf.xlu0
        %v386 = vpop.trf.xlu0
        %v387 = vpop.trf.xlu0
        %v388 = vpop.trf.xlu0
        %v389 = vpop.trf.xlu0
        %v390 = vpop.trf.xlu0
        %v391 = vpop.trf.xlu0
        %v392 = vpop.trf.xlu0
        %v393 = vpop.trf.xlu0
        %v394 = vpop.trf.xlu0
        %v395 = vpop.trf.xlu0
        %v396 = vpop.trf.xlu0
        %397 = vxpose.xlu0.b32.start [1/16] %v174, 128
        %398 = vxpose.xlu0.b32.cont [2/16] %v178, 128
        %399 = vxpose.xlu0.b32.cont [3/16] %v182, 128
        %400 = vxpose.xlu0.b32.cont [4/16] %v186, 128
        %401 = vxpose.xlu0.b32.cont [5/16] %v190, 128
        %402 = vxpose.xlu0.b32.cont [6/16] %v194, 128
        %403 = vxpose.xlu0.b32.cont [7/16] %v198, 128
        %404 = vxpose.xlu0.b32.cont [8/16] %v202, 128
        %405 = vxpose.xlu0.b32.cont [9/16] %v206, 128
        %406 = vxpose.xlu0.b32.cont [10/16] %v210, 128
        %407 = vxpose.xlu0.b32.cont [11/16] %v214, 128
        %408 = vxpose.xlu0.b32.cont [12/16] %v218, 128
        %409 = vxpose.xlu0.b32.cont [13/16] %v222, 128
        %410 = vxpose.xlu0.b32.cont [14/16] %v226, 128
        %411 = vxpose.xlu0.b32.cont [15/16] %v230, 128
        %412 = vxpose.xlu0.b32.end [16/16] %v234, 128
        %v413 = vpop.trf.xlu0
        %v414 = vpop.trf.xlu0
        %v415 = vpop.trf.xlu0
        %v416 = vpop.trf.xlu0
        %v417 = vpop.trf.xlu0
        %v418 = vpop.trf.xlu0
        %v419 = vpop.trf.xlu0
        %v420 = vpop.trf.xlu0
        %v421 = vpop.trf.xlu0
        %v422 = vpop.trf.xlu0
        %v423 = vpop.trf.xlu0
        %v424 = vpop.trf.xlu0
        %v425 = vpop.trf.xlu0
        %v426 = vpop.trf.xlu0
        %v427 = vpop.trf.xlu0
        %v428 = vpop.trf.xlu0
        %429 = vxpose.xlu0.b32.start [1/16] %v175, 128
        %430 = vxpose.xlu0.b32.cont [2/16] %v179, 128
        %431 = vxpose.xlu0.b32.cont [3/16] %v183, 128
        %432 = vxpose.xlu0.b32.cont [4/16] %v187, 128
        %433 = vxpose.xlu0.b32.cont [5/16] %v191, 128
        %434 = vxpose.xlu0.b32.cont [6/16] %v195, 128
        %435 = vxpose.xlu0.b32.cont [7/16] %v199, 128
        %436 = vxpose.xlu0.b32.cont [8/16] %v203, 128
        %437 = vxpose.xlu0.b32.cont [9/16] %v207, 128
        %438 = vxpose.xlu0.b32.cont [10/16] %v211, 128
        %439 = vxpose.xlu0.b32.cont [11/16] %v215, 128
        %440 = vxpose.xlu0.b32.cont [12/16] %v219, 128
        %441 = vxpose.xlu0.b32.cont [13/16] %v223, 128
        %442 = vxpose.xlu0.b32.cont [14/16] %v227, 128
        %443 = vxpose.xlu0.b32.cont [15/16] %v231, 128
        %444 = vxpose.xlu0.b32.end [16/16] %v235, 128
        %v445 = vpop.trf.xlu0
        %v446 = vpop.trf.xlu0
        %v447 = vpop.trf.xlu0
        %v448 = vpop.trf.xlu0
        %v449 = vpop.trf.xlu0
        %v450 = vpop.trf.xlu0
        %v451 = vpop.trf.xlu0
        %v452 = vpop.trf.xlu0
        %v453 = vpop.trf.xlu0
        %v454 = vpop.trf.xlu0
        %v455 = vpop.trf.xlu0
        %v456 = vpop.trf.xlu0
        %v457 = vpop.trf.xlu0
        %v458 = vpop.trf.xlu0
        %v459 = vpop.trf.xlu0
        %v460 = vpop.trf.xlu0
        %461 = vxpose.xlu0.b32.start [1/16] %v176, 128
        %462 = vxpose.xlu0.b32.cont [2/16] %v180, 128
        %463 = vxpose.xlu0.b32.cont [3/16] %v184, 128
        %464 = vxpose.xlu0.b32.cont [4/16] %v188, 128
        %465 = vxpose.xlu0.b32.cont [5/16] %v192, 128
        %466 = vxpose.xlu0.b32.cont [6/16] %v196, 128
        %467 = vxpose.xlu0.b32.cont [7/16] %v200, 128
        %468 = vxpose.xlu0.b32.cont [8/16] %v204, 128
        %469 = vxpose.xlu0.b32.cont [9/16] %v208, 128
        %470 = vxpose.xlu0.b32.cont [10/16] %v212, 128
        %471 = vxpose.xlu0.b32.cont [11/16] %v216, 128
        %472 = vxpose.xlu0.b32.cont [12/16] %v220, 128
        %473 = vxpose.xlu0.b32.cont [13/16] %v224, 128
        %474 = vxpose.xlu0.b32.cont [14/16] %v228, 128
        %475 = vxpose.xlu0.b32.cont [15/16] %v232, 128
        %476 = vxpose.xlu0.b32.end [16/16] %v236, 128
        %v477 = vpop.trf.xlu0
        %v478 = vpop.trf.xlu0
        %v479 = vpop.trf.xlu0
        %v480 = vpop.trf.xlu0
        %v481 = vpop.trf.xlu0
        %v482 = vpop.trf.xlu0
        %v483 = vpop.trf.xlu0
        %v484 = vpop.trf.xlu0
        %v485 = vpop.trf.xlu0
        %v486 = vpop.trf.xlu0
        %v487 = vpop.trf.xlu0
        %v488 = vpop.trf.xlu0
        %v489 = vpop.trf.xlu0
        %v490 = vpop.trf.xlu0
        %v491 = vpop.trf.xlu0
        %v492 = vpop.trf.xlu0
        %493 = vxpose.xlu0.b32.start [1/16] %v237, 128
        %494 = vxpose.xlu0.b32.cont [2/16] %v241, 128
        %495 = vxpose.xlu0.b32.cont [3/16] %v245, 128
        %496 = vxpose.xlu0.b32.cont [4/16] %v249, 128
        %497 = vxpose.xlu0.b32.cont [5/16] %v253, 128
        %498 = vxpose.xlu0.b32.cont [6/16] %v257, 128
        %499 = vxpose.xlu0.b32.cont [7/16] %v261, 128
        %500 = vxpose.xlu0.b32.cont [8/16] %v265, 128
        %501 = vxpose.xlu0.b32.cont [9/16] %v269, 128
        %502 = vxpose.xlu0.b32.cont [10/16] %v273, 128
        %503 = vxpose.xlu0.b32.cont [11/16] %v277, 128
        %504 = vxpose.xlu0.b32.cont [12/16] %v281, 128
        %505 = vxpose.xlu0.b32.cont [13/16] %v285, 128
        %506 = vxpose.xlu0.b32.cont [14/16] %v289, 128
        %507 = vxpose.xlu0.b32.cont [15/16] %v293, 128
        %508 = vxpose.xlu0.b32.end [16/16] %v297, 128
        %v509 = vpop.trf.xlu0
        %v510 = vpop.trf.xlu0
        %v511 = vpop.trf.xlu0
        %v512 = vpop.trf.xlu0
        %v513 = vpop.trf.xlu0
        %v514 = vpop.trf.xlu0
        %v515 = vpop.trf.xlu0
        %v516 = vpop.trf.xlu0
        %v517 = vpop.trf.xlu0
        %v518 = vpop.trf.xlu0
        %v519 = vpop.trf.xlu0
        %v520 = vpop.trf.xlu0
        %v521 = vpop.trf.xlu0
        %v522 = vpop.trf.xlu0
        %v523 = vpop.trf.xlu0
        %v524 = vpop.trf.xlu0
        %525 = vxpose.xlu0.b32.start [1/16] %v238, 128
        %526 = vxpose.xlu0.b32.cont [2/16] %v242, 128
        %527 = vxpose.xlu0.b32.cont [3/16] %v246, 128
        %528 = vxpose.xlu0.b32.cont [4/16] %v250, 128
        %529 = vxpose.xlu0.b32.cont [5/16] %v254, 128
        %530 = vxpose.xlu0.b32.cont [6/16] %v258, 128
        %531 = vxpose.xlu0.b32.cont [7/16] %v262, 128
        %532 = vxpose.xlu0.b32.cont [8/16] %v266, 128
        %533 = vxpose.xlu0.b32.cont [9/16] %v270, 128
        %534 = vxpose.xlu0.b32.cont [10/16] %v274, 128
        %535 = vxpose.xlu0.b32.cont [11/16] %v278, 128
        %536 = vxpose.xlu0.b32.cont [12/16] %v282, 128
        %537 = vxpose.xlu0.b32.cont [13/16] %v286, 128
        %538 = vxpose.xlu0.b32.cont [14/16] %v290, 128
        %539 = vxpose.xlu0.b32.cont [15/16] %v294, 128
        %540 = vxpose.xlu0.b32.end [16/16] %v298, 128
        %v541 = vpop.trf.xlu0
        %v542 = vpop.trf.xlu0
        %v543 = vpop.trf.xlu0
        %v544 = vpop.trf.xlu0
        %v545 = vpop.trf.xlu0
        %v546 = vpop.trf.xlu0
        %v547 = vpop.trf.xlu0
        %v548 = vpop.trf.xlu0
        %v549 = vpop.trf.xlu0
        %v550 = vpop.trf.xlu0
        %v551 = vpop.trf.xlu0
        %v552 = vpop.trf.xlu0
        %v553 = vpop.trf.xlu0
        %v554 = vpop.trf.xlu0
        %v555 = vpop.trf.xlu0
        %v556 = vpop.trf.xlu0
        %557 = vxpose.xlu0.b32.start [1/16] %v239, 128
        %558 = vxpose.xlu0.b32.cont [2/16] %v243, 128
        %559 = vxpose.xlu0.b32.cont [3/16] %v247, 128
        %560 = vxpose.xlu0.b32.cont [4/16] %v251, 128
        %561 = vxpose.xlu0.b32.cont [5/16] %v255, 128
        %562 = vxpose.xlu0.b32.cont [6/16] %v259, 128
        %563 = vxpose.xlu0.b32.cont [7/16] %v263, 128
        %564 = vxpose.xlu0.b32.cont [8/16] %v267, 128
        %565 = vxpose.xlu0.b32.cont [9/16] %v271, 128
        %566 = vxpose.xlu0.b32.cont [10/16] %v275, 128
        %567 = vxpose.xlu0.b32.cont [11/16] %v279, 128
        %568 = vxpose.xlu0.b32.cont [12/16] %v283, 128
        %569 = vxpose.xlu0.b32.cont [13/16] %v287, 128
        %570 = vxpose.xlu0.b32.cont [14/16] %v291, 128
        %571 = vxpose.xlu0.b32.cont [15/16] %v295, 128
        %572 = vxpose.xlu0.b32.end [16/16] %v299, 128
        %v573 = vpop.trf.xlu0
        %v574 = vpop.trf.xlu0
        %v575 = vpop.trf.xlu0
        %v576 = vpop.trf.xlu0
        %v577 = vpop.trf.xlu0
        %v578 = vpop.trf.xlu0
        %v579 = vpop.trf.xlu0
        %v580 = vpop.trf.xlu0
        %v581 = vpop.trf.xlu0
        %v582 = vpop.trf.xlu0
        %v583 = vpop.trf.xlu0
        %v584 = vpop.trf.xlu0
        %v585 = vpop.trf.xlu0
        %v586 = vpop.trf.xlu0
        %v587 = vpop.trf.xlu0
        %v588 = vpop.trf.xlu0
        %589 = vxpose.xlu0.b32.start [1/16] %v240, 128
        %590 = vxpose.xlu0.b32.cont [2/16] %v244, 128
        %591 = vxpose.xlu0.b32.cont [3/16] %v248, 128
        %592 = vxpose.xlu0.b32.cont [4/16] %v252, 128
        %593 = vxpose.xlu0.b32.cont [5/16] %v256, 128
        %594 = vxpose.xlu0.b32.cont [6/16] %v260, 128
        %595 = vxpose.xlu0.b32.cont [7/16] %v264, 128
        %596 = vxpose.xlu0.b32.cont [8/16] %v268, 128
        %597 = vxpose.xlu0.b32.cont [9/16] %v272, 128
        %598 = vxpose.xlu0.b32.cont [10/16] %v276, 128
        %599 = vxpose.xlu0.b32.cont [11/16] %v280, 128
        %600 = vxpose.xlu0.b32.cont [12/16] %v284, 128
        %601 = vxpose.xlu0.b32.cont [13/16] %v288, 128
        %602 = vxpose.xlu0.b32.cont [14/16] %v292, 128
        %603 = vxpose.xlu0.b32.cont [15/16] %v296, 128
        %604 = vxpose.xlu0.b32.end [16/16] %v300, 128
        %v605 = vpop.trf.xlu0
        %v606 = vpop.trf.xlu0
        %v607 = vpop.trf.xlu0
        %v608 = vpop.trf.xlu0
        %v609 = vpop.trf.xlu0
        %v610 = vpop.trf.xlu0
        %v611 = vpop.trf.xlu0
        %v612 = vpop.trf.xlu0
        %v613 = vpop.trf.xlu0
        %v614 = vpop.trf.xlu0
        %v615 = vpop.trf.xlu0
        %v616 = vpop.trf.xlu0
        %v617 = vpop.trf.xlu0
        %v618 = vpop.trf.xlu0
        %v619 = vpop.trf.xlu0
        %v620 = vpop.trf.xlu0
        %621 = vxpose.xlu0.b32.start [1/16] %v301, 128
        %622 = vxpose.xlu0.b32.cont [2/16] %v305, 128
        %623 = vxpose.xlu0.b32.cont [3/16] %v309, 128
        %624 = vxpose.xlu0.b32.cont [4/16] %v313, 128
        %625 = vxpose.xlu0.b32.cont [5/16] %v317, 128
        %626 = vxpose.xlu0.b32.cont [6/16] %v321, 128
        %627 = vxpose.xlu0.b32.cont [7/16] %v325, 128
        %628 = vxpose.xlu0.b32.cont [8/16] %v329, 128
        %629 = vxpose.xlu0.b32.cont [9/16] %v333, 128
        %630 = vxpose.xlu0.b32.cont [10/16] %v337, 128
        %631 = vxpose.xlu0.b32.cont [11/16] %v341, 128
        %632 = vxpose.xlu0.b32.cont [12/16] %v345, 128
        %633 = vxpose.xlu0.b32.cont [13/16] %v349, 128
        %634 = vxpose.xlu0.b32.cont [14/16] %v353, 128
        %635 = vxpose.xlu0.b32.cont [15/16] %v357, 128
        %636 = vxpose.xlu0.b32.end [16/16] %v361, 128
        %v637 = vpop.trf.xlu0
        %v638 = vpop.trf.xlu0
        %v639 = vpop.trf.xlu0
        %v640 = vpop.trf.xlu0
        %v641 = vpop.trf.xlu0
        %v642 = vpop.trf.xlu0
        %v643 = vpop.trf.xlu0
        %v644 = vpop.trf.xlu0
        %v645 = vpop.trf.xlu0
        %v646 = vpop.trf.xlu0
        %v647 = vpop.trf.xlu0
        %v648 = vpop.trf.xlu0
        %v649 = vpop.trf.xlu0
        %v650 = vpop.trf.xlu0
        %v651 = vpop.trf.xlu0
        %v652 = vpop.trf.xlu0
        %653 = vxpose.xlu0.b32.start [1/16] %v302, 128
        %654 = vxpose.xlu0.b32.cont [2/16] %v306, 128
        %655 = vxpose.xlu0.b32.cont [3/16] %v310, 128
        %656 = vxpose.xlu0.b32.cont [4/16] %v314, 128
        %657 = vxpose.xlu0.b32.cont [5/16] %v318, 128
        %658 = vxpose.xlu0.b32.cont [6/16] %v322, 128
        %659 = vxpose.xlu0.b32.cont [7/16] %v326, 128
        %660 = vxpose.xlu0.b32.cont [8/16] %v330, 128
        %661 = vxpose.xlu0.b32.cont [9/16] %v334, 128
        %662 = vxpose.xlu0.b32.cont [10/16] %v338, 128
        %663 = vxpose.xlu0.b32.cont [11/16] %v342, 128
        %664 = vxpose.xlu0.b32.cont [12/16] %v346, 128
        %665 = vxpose.xlu0.b32.cont [13/16] %v350, 128
        %666 = vxpose.xlu0.b32.cont [14/16] %v354, 128
        %667 = vxpose.xlu0.b32.cont [15/16] %v358, 128
        %668 = vxpose.xlu0.b32.end [16/16] %v362, 128
        %v669 = vpop.trf.xlu0
        %v670 = vpop.trf.xlu0
        %v671 = vpop.trf.xlu0
        %v672 = vpop.trf.xlu0
        %v673 = vpop.trf.xlu0
        %v674 = vpop.trf.xlu0
        %v675 = vpop.trf.xlu0
        %v676 = vpop.trf.xlu0
        %v677 = vpop.trf.xlu0
        %v678 = vpop.trf.xlu0
        %v679 = vpop.trf.xlu0
        %v680 = vpop.trf.xlu0
        %v681 = vpop.trf.xlu0
        %v682 = vpop.trf.xlu0
        %v683 = vpop.trf.xlu0
        %v684 = vpop.trf.xlu0
        %685 = vxpose.xlu0.b32.start [1/16] %v303, 128
        %686 = vxpose.xlu0.b32.cont [2/16] %v307, 128
        %687 = vxpose.xlu0.b32.cont [3/16] %v311, 128
        %688 = vxpose.xlu0.b32.cont [4/16] %v315, 128
        %689 = vxpose.xlu0.b32.cont [5/16] %v319, 128
        %690 = vxpose.xlu0.b32.cont [6/16] %v323, 128
        %691 = vxpose.xlu0.b32.cont [7/16] %v327, 128
        %692 = vxpose.xlu0.b32.cont [8/16] %v331, 128
        %693 = vxpose.xlu0.b32.cont [9/16] %v335, 128
        %694 = vxpose.xlu0.b32.cont [10/16] %v339, 128
        %695 = vxpose.xlu0.b32.cont [11/16] %v343, 128
        %696 = vxpose.xlu0.b32.cont [12/16] %v347, 128
        %697 = vxpose.xlu0.b32.cont [13/16] %v351, 128
        %698 = vxpose.xlu0.b32.cont [14/16] %v355, 128
        %699 = vxpose.xlu0.b32.cont [15/16] %v359, 128
        %700 = vxpose.xlu0.b32.end [16/16] %v363, 128
        %v701 = vpop.trf.xlu0
        %v702 = vpop.trf.xlu0
        %v703 = vpop.trf.xlu0
        %v704 = vpop.trf.xlu0
        %v705 = vpop.trf.xlu0
        %v706 = vpop.trf.xlu0
        %v707 = vpop.trf.xlu0
        %v708 = vpop.trf.xlu0
        %v709 = vpop.trf.xlu0
        %v710 = vpop.trf.xlu0
        %v711 = vpop.trf.xlu0
        %v712 = vpop.trf.xlu0
        %v713 = vpop.trf.xlu0
        %v714 = vpop.trf.xlu0
        %v715 = vpop.trf.xlu0
        %v716 = vpop.trf.xlu0
        %717 = vxpose.xlu0.b32.start [1/16] %v304, 128
        %718 = vxpose.xlu0.b32.cont [2/16] %v308, 128
        %719 = vxpose.xlu0.b32.cont [3/16] %v312, 128
        %720 = vxpose.xlu0.b32.cont [4/16] %v316, 128
        %721 = vxpose.xlu0.b32.cont [5/16] %v320, 128
        %722 = vxpose.xlu0.b32.cont [6/16] %v324, 128
        %723 = vxpose.xlu0.b32.cont [7/16] %v328, 128
        %724 = vxpose.xlu0.b32.cont [8/16] %v332, 128
        %725 = vxpose.xlu0.b32.cont [9/16] %v336, 128
        %726 = vxpose.xlu0.b32.cont [10/16] %v340, 128
        %727 = vxpose.xlu0.b32.cont [11/16] %v344, 128
        %728 = vxpose.xlu0.b32.cont [12/16] %v348, 128
        %729 = vxpose.xlu0.b32.cont [13/16] %v352, 128
        %730 = vxpose.xlu0.b32.cont [14/16] %v356, 128
        %731 = vxpose.xlu0.b32.cont [15/16] %v360, 128
        %732 = vxpose.xlu0.b32.end [16/16] %v364, 128
        %v733 = vpop.trf.xlu0
        %v734 = vpop.trf.xlu0
        %v735 = vpop.trf.xlu0
        %v736 = vpop.trf.xlu0
        %v737 = vpop.trf.xlu0
        %v738 = vpop.trf.xlu0
        %v739 = vpop.trf.xlu0
        %v740 = vpop.trf.xlu0
        %v741 = vpop.trf.xlu0
        %v742 = vpop.trf.xlu0
        %v743 = vpop.trf.xlu0
        %v744 = vpop.trf.xlu0
        %v745 = vpop.trf.xlu0
        %v746 = vpop.trf.xlu0
        %v747 = vpop.trf.xlu0
        %v748 = vpop.trf.xlu0
        %749 = vst [vmem:[%s168] sm:$0xff] %v381
        %750 = vst [vmem:[%s168 + $0x8] sm:$0xff] %v509
        %751 = vst [vmem:[%s168 + $0x10] sm:$0xff] %v637
        %752 = vst [vmem:[%s168 + $0x18] sm:$0xff] %v382
        %753 = vst [vmem:[%s168 + $0x20] sm:$0xff] %v510
        %754 = vst [vmem:[%s168 + $0x28] sm:$0xff] %v638
        %755 = vst [vmem:[%s168 + $0x30] sm:$0xff] %v383
        %756 = vst [vmem:[%s168 + $0x38] sm:$0xff] %v511
        %757 = vst [vmem:[%s168 + $0x40] sm:$0xff] %v639
        %758 = vst [vmem:[%s168 + $0x48] sm:$0xff] %v384
        %759 = vst [vmem:[%s168 + $0x50] sm:$0xff] %v512
        %760 = vst [vmem:[%s168 + $0x58] sm:$0xff] %v640
        %761 = vst [vmem:[%s168 + $0x60] sm:$0xff] %v385
        %762 = vst [vmem:[%s168 + $0x68] sm:$0xff] %v513
        %763 = vst [vmem:[%s168 + $0x70] sm:$0xff] %v641
        %764 = vst [vmem:[%s168 + $0x78] sm:$0xff] %v386
        %765 = vst [vmem:[%s168 + $0x80] sm:$0xff] %v514
        %766 = vst [vmem:[%s168 + $0x88] sm:$0xff] %v642
        %767 = vst [vmem:[%s168 + $0x90] sm:$0xff] %v387
        %768 = vst [vmem:[%s168 + $0x98] sm:$0xff] %v515
        %769 = vst [vmem:[%s168 + $0xa0] sm:$0xff] %v643
        %770 = vst [vmem:[%s168 + $0xa8] sm:$0xff] %v388
        %771 = vst [vmem:[%s168 + $0xb0] sm:$0xff] %v516
        %772 = vst [vmem:[%s168 + $0xb8] sm:$0xff] %v644
        %773 = vst [vmem:[%s168 + $0xc0] sm:$0xff] %v389
        %774 = vst [vmem:[%s168 + $0xc8] sm:$0xff] %v517
        %775 = vst [vmem:[%s168 + $0xd0] sm:$0xff] %v645
        %776 = vst [vmem:[%s168 + $0xd8] sm:$0xff] %v390
        %777 = vst [vmem:[%s168 + $0xe0] sm:$0xff] %v518
        %778 = vst [vmem:[%s168 + $0xe8] sm:$0xff] %v646
        %779 = vst [vmem:[%s168 + $0xf0] sm:$0xff] %v391
        %780 = vst [vmem:[%s168 + $0xf8] sm:$0xff] %v519
        %781 = vst [vmem:[%s168 + $0x100] sm:$0xff] %v647
        %782 = vst [vmem:[%s168 + $0x108] sm:$0xff] %v392
        %783 = vst [vmem:[%s168 + $0x110] sm:$0xff] %v520
        %784 = vst [vmem:[%s168 + $0x118] sm:$0xff] %v648
        %785 = vst [vmem:[%s168 + $0x120] sm:$0xff] %v393
        %786 = vst [vmem:[%s168 + $0x128] sm:$0xff] %v521
        %787 = vst [vmem:[%s168 + $0x130] sm:$0xff] %v649
        %788 = vst [vmem:[%s168 + $0x138] sm:$0xff] %v394
        %789 = vst [vmem:[%s168 + $0x140] sm:$0xff] %v522
        %790 = vst [vmem:[%s168 + $0x148] sm:$0xff] %v650
        %791 = vst [vmem:[%s168 + $0x150] sm:$0xff] %v395
        %792 = vst [vmem:[%s168 + $0x158] sm:$0xff] %v523
        %793 = vst [vmem:[%s168 + $0x160] sm:$0xff] %v651
        %794 = vst [vmem:[%s168 + $0x168] sm:$0xff] %v396
        %795 = vst [vmem:[%s168 + $0x170] sm:$0xff] %v524
        %796 = vst [vmem:[%s168 + $0x178] sm:$0xff] %v652
        %797 = vst [vmem:[%s168 + $0x180] sm:$0xff] %v413
        %798 = vst [vmem:[%s168 + $0x188] sm:$0xff] %v541
        %799 = vst [vmem:[%s168 + $0x190] sm:$0xff] %v669
        %800 = vst [vmem:[%s168 + $0x198] sm:$0xff] %v414
        %801 = vst [vmem:[%s168 + $0x1a0] sm:$0xff] %v542
        %802 = vst [vmem:[%s168 + $0x1a8] sm:$0xff] %v670
        %803 = vst [vmem:[%s168 + $0x1b0] sm:$0xff] %v415
        %804 = vst [vmem:[%s168 + $0x1b8] sm:$0xff] %v543
        %805 = vst [vmem:[%s168 + $0x1c0] sm:$0xff] %v671
        %806 = vst [vmem:[%s168 + $0x1c8] sm:$0xff] %v416
        %807 = vst [vmem:[%s168 + $0x1d0] sm:$0xff] %v544
        %808 = vst [vmem:[%s168 + $0x1d8] sm:$0xff] %v672
        %809 = vst [vmem:[%s168 + $0x1e0] sm:$0xff] %v417
        %810 = vst [vmem:[%s168 + $0x1e8] sm:$0xff] %v545
        %811 = vst [vmem:[%s168 + $0x1f0] sm:$0xff] %v673
        %812 = vst [vmem:[%s168 + $0x1f8] sm:$0xff] %v418
        %813 = vst [vmem:[%s168 + $0x200] sm:$0xff] %v546
        %814 = vst [vmem:[%s168 + $0x208] sm:$0xff] %v674
        %815 = vst [vmem:[%s168 + $0x210] sm:$0xff] %v419
        %816 = vst [vmem:[%s168 + $0x218] sm:$0xff] %v547
        %817 = vst [vmem:[%s168 + $0x220] sm:$0xff] %v675
        %818 = vst [vmem:[%s168 + $0x228] sm:$0xff] %v420
        %819 = vst [vmem:[%s168 + $0x230] sm:$0xff] %v548
        %820 = vst [vmem:[%s168 + $0x238] sm:$0xff] %v676
        %821 = vst [vmem:[%s168 + $0x240] sm:$0xff] %v421
        %822 = vst [vmem:[%s168 + $0x248] sm:$0xff] %v549
        %823 = vst [vmem:[%s168 + $0x250] sm:$0xff] %v677
        %824 = vst [vmem:[%s168 + $0x258] sm:$0xff] %v422
        %825 = vst [vmem:[%s168 + $0x260] sm:$0xff] %v550
        %826 = vst [vmem:[%s168 + $0x268] sm:$0xff] %v678
        %827 = vst [vmem:[%s168 + $0x270] sm:$0xff] %v423
        %828 = vst [vmem:[%s168 + $0x278] sm:$0xff] %v551
        %829 = vst [vmem:[%s168 + $0x280] sm:$0xff] %v679
        %830 = vst [vmem:[%s168 + $0x288] sm:$0xff] %v424
        %831 = vst [vmem:[%s168 + $0x290] sm:$0xff] %v552
        %832 = vst [vmem:[%s168 + $0x298] sm:$0xff] %v680
        %833 = vst [vmem:[%s168 + $0x2a0] sm:$0xff] %v425
        %834 = vst [vmem:[%s168 + $0x2a8] sm:$0xff] %v553
        %835 = vst [vmem:[%s168 + $0x2b0] sm:$0xff] %v681
        %836 = vst [vmem:[%s168 + $0x2b8] sm:$0xff] %v426
        %837 = vst [vmem:[%s168 + $0x2c0] sm:$0xff] %v554
        %838 = vst [vmem:[%s168 + $0x2c8] sm:$0xff] %v682
        %839 = vst [vmem:[%s168 + $0x2d0] sm:$0xff] %v427
        %840 = vst [vmem:[%s168 + $0x2d8] sm:$0xff] %v555
        %841 = vst [vmem:[%s168 + $0x2e0] sm:$0xff] %v683
        %842 = vst [vmem:[%s168 + $0x2e8] sm:$0xff] %v428
        %843 = vst [vmem:[%s168 + $0x2f0] sm:$0xff] %v556
        %844 = vst [vmem:[%s168 + $0x2f8] sm:$0xff] %v684
        %845 = vst [vmem:[%s168 + $0x300] sm:$0xff] %v445
        %846 = vst [vmem:[%s168 + $0x308] sm:$0xff] %v573
        %847 = vst [vmem:[%s168 + $0x310] sm:$0xff] %v701
        %848 = vst [vmem:[%s168 + $0x318] sm:$0xff] %v446
        %849 = vst [vmem:[%s168 + $0x320] sm:$0xff] %v574
        %850 = vst [vmem:[%s168 + $0x328] sm:$0xff] %v702
        %851 = vst [vmem:[%s168 + $0x330] sm:$0xff] %v447
        %852 = vst [vmem:[%s168 + $0x338] sm:$0xff] %v575
        %853 = vst [vmem:[%s168 + $0x340] sm:$0xff] %v703
        %854 = vst [vmem:[%s168 + $0x348] sm:$0xff] %v448
        %855 = vst [vmem:[%s168 + $0x350] sm:$0xff] %v576
        %856 = vst [vmem:[%s168 + $0x358] sm:$0xff] %v704
        %857 = vst [vmem:[%s168 + $0x360] sm:$0xff] %v449
        %858 = vst [vmem:[%s168 + $0x368] sm:$0xff] %v577
        %859 = vst [vmem:[%s168 + $0x370] sm:$0xff] %v705
        %860 = vst [vmem:[%s168 + $0x378] sm:$0xff] %v450
        %861 = vst [vmem:[%s168 + $0x380] sm:$0xff] %v578
        %862 = vst [vmem:[%s168 + $0x388] sm:$0xff] %v706
        %863 = vst [vmem:[%s168 + $0x390] sm:$0xff] %v451
        %864 = vst [vmem:[%s168 + $0x398] sm:$0xff] %v579
        %865 = vst [vmem:[%s168 + $0x3a0] sm:$0xff] %v707
        %866 = vst [vmem:[%s168 + $0x3a8] sm:$0xff] %v452
        %867 = vst [vmem:[%s168 + $0x3b0] sm:$0xff] %v580
        %868 = vst [vmem:[%s168 + $0x3b8] sm:$0xff] %v708
        %869 = vst [vmem:[%s168 + $0x3c0] sm:$0xff] %v453
        %870 = vst [vmem:[%s168 + $0x3c8] sm:$0xff] %v581
        %871 = vst [vmem:[%s168 + $0x3d0] sm:$0xff] %v709
        %872 = vst [vmem:[%s168 + $0x3d8] sm:$0xff] %v454
        %873 = vst [vmem:[%s168 + $0x3e0] sm:$0xff] %v582
        %874 = vst [vmem:[%s168 + $0x3e8] sm:$0xff] %v710
        %875 = vst [vmem:[%s168 + $0x3f0] sm:$0xff] %v455
        %876 = vst [vmem:[%s168 + $0x3f8] sm:$0xff] %v583
        %877 = vst [vmem:[%s168 + $0x400] sm:$0xff] %v711
        %878 = vst [vmem:[%s168 + $0x408] sm:$0xff] %v456
        %879 = vst [vmem:[%s168 + $0x410] sm:$0xff] %v584
        %880 = vst [vmem:[%s168 + $0x418] sm:$0xff] %v712
        %881 = vst [vmem:[%s168 + $0x420] sm:$0xff] %v457
        %882 = vst [vmem:[%s168 + $0x428] sm:$0xff] %v585
        %883 = vst [vmem:[%s168 + $0x430] sm:$0xff] %v713
        %884 = vst [vmem:[%s168 + $0x438] sm:$0xff] %v458
        %885 = vst [vmem:[%s168 + $0x440] sm:$0xff] %v586
        %886 = vst [vmem:[%s168 + $0x448] sm:$0xff] %v714
        %887 = vst [vmem:[%s168 + $0x450] sm:$0xff] %v459
        %888 = vst [vmem:[%s168 + $0x458] sm:$0xff] %v587
        %889 = vst [vmem:[%s168 + $0x460] sm:$0xff] %v715
        %890 = vst [vmem:[%s168 + $0x468] sm:$0xff] %v460
        %891 = vst [vmem:[%s168 + $0x470] sm:$0xff] %v588
        %892 = vst [vmem:[%s168 + $0x478] sm:$0xff] %v716
        %893 = vst [vmem:[%s168 + $0x480] sm:$0xff] %v477
        %894 = vst [vmem:[%s168 + $0x488] sm:$0xff] %v605
        %895 = vst [vmem:[%s168 + $0x490] sm:$0xff] %v733
        %896 = vst [vmem:[%s168 + $0x498] sm:$0xff] %v478
        %897 = vst [vmem:[%s168 + $0x4a0] sm:$0xff] %v606
        %898 = vst [vmem:[%s168 + $0x4a8] sm:$0xff] %v734
        %899 = vst [vmem:[%s168 + $0x4b0] sm:$0xff] %v479
        %900 = vst [vmem:[%s168 + $0x4b8] sm:$0xff] %v607
        %901 = vst [vmem:[%s168 + $0x4c0] sm:$0xff] %v735
        %902 = vst [vmem:[%s168 + $0x4c8] sm:$0xff] %v480
        %903 = vst [vmem:[%s168 + $0x4d0] sm:$0xff] %v608
        %904 = vst [vmem:[%s168 + $0x4d8] sm:$0xff] %v736
        %905 = vst [vmem:[%s168 + $0x4e0] sm:$0xff] %v481
        %906 = vst [vmem:[%s168 + $0x4e8] sm:$0xff] %v609
        %907 = vst [vmem:[%s168 + $0x4f0] sm:$0xff] %v737
        %908 = vst [vmem:[%s168 + $0x4f8] sm:$0xff] %v482
        %909 = vst [vmem:[%s168 + $0x500] sm:$0xff] %v610
        %910 = vst [vmem:[%s168 + $0x508] sm:$0xff] %v738
        %911 = vst [vmem:[%s168 + $0x510] sm:$0xff] %v483
        %912 = vst [vmem:[%s168 + $0x518] sm:$0xff] %v611
        %913 = vst [vmem:[%s168 + $0x520] sm:$0xff] %v739
        %914 = vst [vmem:[%s168 + $0x528] sm:$0xff] %v484
        %915 = vst [vmem:[%s168 + $0x530] sm:$0xff] %v612
        %916 = vst [vmem:[%s168 + $0x538] sm:$0xff] %v740
        %917 = vst [vmem:[%s168 + $0x540] sm:$0xff] %v485
        %918 = vst [vmem:[%s168 + $0x548] sm:$0xff] %v613
        %919 = vst [vmem:[%s168 + $0x550] sm:$0xff] %v741
        %920 = vst [vmem:[%s168 + $0x558] sm:$0xff] %v486
        %921 = vst [vmem:[%s168 + $0x560] sm:$0xff] %v614
        %922 = vst [vmem:[%s168 + $0x568] sm:$0xff] %v742
        %923 = vst [vmem:[%s168 + $0x570] sm:$0xff] %v487
        %924 = vst [vmem:[%s168 + $0x578] sm:$0xff] %v615
        %925 = vst [vmem:[%s168 + $0x580] sm:$0xff] %v743
        %926 = vst [vmem:[%s168 + $0x588] sm:$0xff] %v488
        %927 = vst [vmem:[%s168 + $0x590] sm:$0xff] %v616
        %928 = vst [vmem:[%s168 + $0x598] sm:$0xff] %v744
        %929 = vst [vmem:[%s168 + $0x5a0] sm:$0xff] %v489
        %930 = vst [vmem:[%s168 + $0x5a8] sm:$0xff] %v617
        %931 = vst [vmem:[%s168 + $0x5b0] sm:$0xff] %v745
        %932 = vst [vmem:[%s168 + $0x5b8] sm:$0xff] %v490
        %933 = vst [vmem:[%s168 + $0x5c0] sm:$0xff] %v618
        %934 = vst [vmem:[%s168 + $0x5c8] sm:$0xff] %v746
        %935 = vst [vmem:[%s168 + $0x5d0] sm:$0xff] %v491
        %936 = vst [vmem:[%s168 + $0x5d8] sm:$0xff] %v619
        %937 = vst [vmem:[%s168 + $0x5e0] sm:$0xff] %v747
        %938 = vst [vmem:[%s168 + $0x5e8] sm:$0xff] %v492
        %939 = vst [vmem:[%s168 + $0x5f0] sm:$0xff] %v620
        %940 = vst [vmem:[%s168 + $0x5f8] sm:$0xff] %v748
        %s941 = sand.u32 %s79, 1
        %s942 = scalar_lea.sflag [#allocation4], %s941
        %s943 = sand.u32 %s79, 1
        %s944 = smul.addr %s943, 1536
        %s945 = scalar_lea.vmem [#allocation5], %s944
        // Predicated region
        $region29: #{tpu_custom_call.1} parent=23 // pred_check
          %p946 = pneg %p89
        $region30: #{tpu_custom_call.1} parent=23 // pred_check_branch
          %948 = sbr.rel (%p946) target = $region32
        $region31: #{tpu_custom_call.1} parent=23 // pred_region
          %s949 = smul.u32 64, %s24
          %s950 = smul.u32 3, %s25
          %952 = vsyncadd %s942, 0
          %s953 = smul.addr %s949, 3
          %s954 = sadd.s32 %s950, %s953
          %s955 = smul.addr %s23, 192
          %s956 = sadd.s32 %s954, %s955
          %s957 = smul.addr %s956, 8
          %s958 = scalar_lea.hbm %s1, %s957
          %s959 = sshll.u32 %s945, 4
          %s960 = int_to_ptr.vmem [resolvable:$true] %s959
          %s961 = sshll.u32 %s958, 4
          %s962 = int_to_ptr.hbm [resolvable:$true] %s961
          %967 = dma.vmem_to_hbm [thread:$0]  %s960, 24576, %s962, %s942, 384, 384, 24
        $region32: #{tpu_custom_call.1} parent=23 // pred_fallthru
          _
      $region24: #{tpu_custom_call.1} parent=5 // pred_fallthru
        _
      %p968 = scmp.le.s32.totalorder 2, %s13
      // Predicated region
      $region33: #{tpu_custom_call.1} parent=5 // pred_check
        %p969 = pneg %p968
      $region34: #{tpu_custom_call.1} parent=5 // pred_check_branch
        %971 = sbr.rel (%p969) target = $region36
      $region35: #{tpu_custom_call.1} parent=5 // pred_region
        %s972 = ssub.s32 %s13, 2
        // Predicated region
        $region37: #{tpu_custom_call.1} parent=35 // pred_check
          %p973 = pneg %p95
        $region38: #{tpu_custom_call.1} parent=35 // pred_check_branch
          %975 = sbr.rel (%p973) target = $region40
        $region39: #{tpu_custom_call.1} parent=35 // pred_region
          %s976 = sand.u32 %s80, 1
          %s977 = scalar_lea.sflag [#allocation4], %s976
          %s978 = sand.u32 %s80, 1
          %s979 = smul.addr %s978, 1536
          %s980 = scalar_lea.vmem [#allocation5], %s979
          %982 = dma.done %s977, 24576
        $region40: #{tpu_custom_call.1} parent=35 // pred_fallthru
          _
      $region36: #{tpu_custom_call.1} parent=5 // pred_fallthru
        _
    $region6: #{tpu_custom_call.1} parent=1 // loop_footer
      %s17 = sadd.s32 1, %s13
    $region7: #{tpu_custom_call.1} parent=1 // loop_footer_branch
      %12 = sbr.rel target = $region3
    $region8: #{tpu_custom_call.1} parent=1 // loop_exit
      _
    %983 = vsyncpa [#allocation3], 1
    %s984 = scalar_lea.sflag [#allocation3], 1
    %985 = vsyncpa %s984, 1
    %986 = vsyncpa [#allocation4], 1
    %s987 = scalar_lea.sflag [#allocation4], 1
    %988 = vsyncpa %s987, 1

</llo_original>
